<compile_context>
chip_gen: v5e
topology: v5e:2x2
jax: 0.10.0
libtpu: 0.0.40
codegen_flags: <defaults>
</compile_context>

<pallas_src>
import functools

import jax
import jax.numpy as jnp
from jax.experimental import pallas as pl
from jax.experimental.pallas import tpu as pltpu


def _round_up(x, m):
    return (x + m - 1) // m * m


def _conv_taps_kernel(wa_ref, wb_ref, b_ref, z_ref, o_ref, *, wo, ke):
    """out = relu(Wa @ Z  +  shift_left_by_wo(Wb @ Z[:ke])  +  bias).

    Z  (2*ke, TM): column-im2col'd input; rows 0:ke = even padded rows,
                   rows ke:2*ke = odd padded rows; lanes = (batch block,
                   output row, output col) flattened, batch-block aligned.
    Wa (Cout, 2*ke): kernel row taps i=0 (even rows) and i=1 (odd rows).
    Wb (Cout,   ke): kernel row tap  i=2 (even rows, one output row below).
    """
    z = z_ref[...]                                                     # (2*ke, TM)
    p = jnp.dot(wa_ref[...], z, preferred_element_type=jnp.float32)   # (Cout, TM)
    q = jnp.dot(wb_ref[...], z[:ke, :],
                preferred_element_type=jnp.float32)                   # (Cout, TM)
    # i=2 row-tap of output row oh lives at lane (oh+1)*wo + ow of q: shift q
    # left by wo lanes.  The wrapped-around tail only lands in the per-batch
    # garbage lanes that the wrapper slices off, so a rotate is sufficient.
    q = jnp.concatenate([q[:, wo:], q[:, :wo]], axis=-1)
    o_ref[...] = jnp.maximum(p + q + b_ref[...], 0.0).astype(o_ref.dtype)


def net_1d_forward(x_nchw, weight, bias):
    """Conv2d(Cin->Cout, k=3x3, stride=2, pad=1) + ReLU.  x: NCHW, weight: OIHW."""
    n, cin, h, w = x_nchw.shape
    cout, _, kh, kw = weight.shape
    assert (kh, kw) == (3, 3)
    stride, pad = 2, 1
    ho = (h + 2 * pad - kh) // stride + 1
    wo = (w + 2 * pad - kw) // stride + 1
    hb = ho + 1                    # rows kept per parity (i=2 tap needs row ho)
    kcol = kw * cin                # 48: (column-tap, channel) contraction rows

    # ---- XLA glue: one fused gather, ~1.6x input bytes (no 144-row im2col) ----
    xp = jnp.pad(x_nchw, ((0, 0), (0, 0), (pad, pad), (pad, pad)))
    ce = xp[:, :, :, 0::2]                       # even padded columns
    codd = xp[:, :, :, 1::2]                     # odd padded columns
    t0 = ce[:, :, :, :wo]                        # j=0: col 2*ow
    t1 = codd[:, :, :, :wo]                      # j=1: col 2*ow+1
    t2 = ce[:, :, :, 1:wo + 1]                   # j=2: col 2*ow+2
    zcol = jnp.stack([t0, t1, t2], axis=1)       # (n, 3, cin, Hp, wo)
    ze = zcol[:, :, :, 0::2, :][:, :, :, :hb, :]  # even padded rows (n,3,cin,hb,wo)
    zo = zcol[:, :, :, 1::2, :][:, :, :, :hb, :]  # odd padded rows
    if zo.shape[3] < hb:                         # odd H: pad one (garbage-only) row
        zo = jnp.pad(zo, ((0, 0), (0, 0), (0, 0), (0, hb - zo.shape[3]), (0, 0)))

    lb = hb * wo                                 # lanes per batch block
    ze = ze.reshape(n, kcol, lb)
    zo = zo.reshape(n, kcol, lb)
    zz = jnp.concatenate([ze, zo], axis=1)       # (n, 2*kcol, lb)
    lbp = _round_up(lb, 128)                     # lane-dense batch blocks
    if lbp != lb:
        zz = jnp.pad(zz, ((0, 0), (0, 0), (0, lbp - lb)))
    zz = jnp.transpose(zz, (1, 0, 2)).reshape(2 * kcol, n * lbp)

    # ---- fold batch into lanes; big tiles, >=2 parallel grid blocks for v7x ----
    if n >= 2:
        nb = max(1, min(n // 2, max(1, 8192 // lbp)))   # batches per tile
    else:
        nb = 1
    n_pad = _round_up(n, nb)
    if n_pad != n:
        zz = jnp.pad(zz, ((0, 0), (0, (n_pad - n) * lbp)))
    m_total = n_pad * lbp
    tm = nb * lbp
    num_tiles = m_total // tm

    # ---- weights rearranged to [co, i, j*cin + ci] matching the zz row order ----
    wstk = jnp.transpose(weight, (0, 2, 3, 1)).reshape(cout, kh, kcol)
    wa = jnp.concatenate([wstk[:, 0, :], wstk[:, 1, :]], axis=1).astype(x_nchw.dtype)
    wb = wstk[:, 2, :].astype(x_nchw.dtype)
    b2 = bias.reshape(cout, 1).astype(jnp.float32)

    itemsize = x_nchw.dtype.itemsize
    cost = pl.CostEstimate(
        flops=2 * m_total * cout * (3 * kcol) + 4 * m_total * cout,
        transcendentals=0,
        bytes_accessed=(zz.size + wa.size + wb.size + b2.size + cout * m_total)
        * itemsize)

    kernel = functools.partial(_conv_taps_kernel, wo=wo, ke=kcol)

    out2 = pl.pallas_call(
        kernel,
        out_shape=jax.ShapeDtypeStruct((cout, m_total), x_nchw.dtype),
        grid=(num_tiles,),
        in_specs=[
            pl.BlockSpec((cout, 2 * kcol), lambda i: (0, 0)),   # Wa (taps i=0,1)
            pl.BlockSpec((cout, kcol), lambda i: (0, 0)),       # Wb (tap i=2)
            pl.BlockSpec((cout, 1), lambda i: (0, 0)),          # bias
            pl.BlockSpec((2 * kcol, tm), lambda i: (0, i)),     # ZZ tile
        ],
        out_specs=pl.BlockSpec((cout, tm), lambda i: (0, i)),
        compiler_params=pltpu.CompilerParams(
            dimension_semantics=("parallel",),
            vmem_limit_bytes=32 * 1024 * 1024),
        cost_estimate=cost,
    )(wa, wb, b2, zz)

    # (Cout, n_pad*lbp) -> NCHW; only the first ho*wo lanes of each block are valid.
    out = out2.reshape(cout, n_pad, lbp)[:, :n, :lb]
    out = out.reshape(cout, n, hb, wo)[:, :, :ho, :]
    return jnp.transpose(out, (1, 0, 2, 3))


if __name__ == "__main__":
    key = jax.random.PRNGKey(0)
    k_x, k_w, k_b = jax.random.split(key, 3)

    # Small shapes consistent with the module (Cin=16 is fixed by the conv;
    # spatial dims match the reference input 30x32, batch shrunk to 2).
    N, C_IN, H, W = 2, 16, 30, 32
    C_OUT, KH, KW = 2, 3, 3

    x = jax.random.normal(k_x, (N, C_IN, H, W), dtype=jnp.float32)
    fan_in = C_IN * KH * KW
    weight = jax.random.normal(k_w, (C_OUT, C_IN, KH, KW),
                               dtype=jnp.float32) * (1.0 / fan_in) ** 0.5
    bias = jax.random.normal(k_b, (C_OUT,), dtype=jnp.float32) * 0.01

    fwd = jax.jit(net_1d_forward)
    out = jax.block_until_ready(fwd(x, weight, bias))

    # Reference: XLA conv with identical semantics to PyTorch Conv2d + ReLU.
    ref = jax.lax.conv_general_dilated(
        x, weight, window_strides=(2, 2), padding=((1, 1), (1, 1)),
        dimension_numbers=("NCHW", "OIHW", "NCHW"))
    ref = jnp.maximum(ref + bias.reshape(1, C_OUT, 1, 1), 0.0)

    ho = (H + 2 - 3) // 2 + 1
    wo = (W + 2 - 3) // 2 + 1
    assert out.shape == (N, C_OUT, ho, wo), out.shape
    assert jnp.allclose(out, ref, atol=1e-5, rtol=1e-5), (
        float(jnp.max(jnp.abs(out - ref))))
    print("KERNEL_OK")
</pallas_src>

<mosaic_0001>
module attributes {stable_mosaic.version = 11 : i64} {
  func.func @_conv_taps_kernel(%arg0: i32, %arg1: memref<2x96xf32, #tpu.memory_space<vmem>>, %arg2: memref<2x48xf32, #tpu.memory_space<vmem>>, %arg3: memref<2x1xf32, #tpu.memory_space<vmem>>, %arg4: memref<96x256xf32, #tpu.memory_space<vmem>>, %arg5: memref<2x256xf32, #tpu.memory_space<vmem>>) attributes {dimension_semantics = [#tpu.dimension_semantics<parallel>], iteration_bounds = array<i64: 2>, scalar_prefetch = 0 : i64, scratch_operands = 0 : i64, tpu.core_type = #tpu.core_type<tc>, window_params = [{pipeline_mode = #tpu.pipeline_mode<synchronous>, transform_indices = @transform_0, window_bounds = array<i64: 2, 96>}, {pipeline_mode = #tpu.pipeline_mode<synchronous>, transform_indices = @transform_1, window_bounds = array<i64: 2, 48>}, {pipeline_mode = #tpu.pipeline_mode<synchronous>, transform_indices = @transform_2, window_bounds = array<i64: 2, 1>}, {transform_indices = @transform_3, window_bounds = array<i64: 96, 256>}, {transform_indices = @transform_4, window_bounds = array<i64: 2, 256>}]} {
    %c0 = arith.constant 0 : index
    %c0_0 = arith.constant 0 : index
    %0 = vector.load %arg4[%c0, %c0_0] : memref<96x256xf32, #tpu.memory_space<vmem>>, vector<96x256xf32>
    %c0_1 = arith.constant 0 : index
    %c0_2 = arith.constant 0 : index
    %1 = vector.load %arg1[%c0_1, %c0_2] : memref<2x96xf32, #tpu.memory_space<vmem>>, vector<2x96xf32>
    %cst = arith.constant dense<0.000000e+00> : vector<2x256xf32>
    %2 = tpu.matmul %1, %0, %cst {dimension_numbers = #tpu.dot_dimension_numbers<[1], [0], [0], [1], [0, 0, 1, 1], [], []>} : vector<2x96xf32>, vector<96x256xf32>, vector<2x256xf32> -> vector<2x256xf32>
    %c0_3 = arith.constant 0 : index
    %c0_4 = arith.constant 0 : index
    %3 = vector.load %arg2[%c0_3, %c0_4] : memref<2x48xf32, #tpu.memory_space<vmem>>, vector<2x48xf32>
    %4 = vector.extract_strided_slice %0 {offsets = [0, 0], sizes = [48, 256], strides = [1, 1]} : vector<96x256xf32> to vector<48x256xf32>
    %cst_5 = arith.constant dense<0.000000e+00> : vector<2x256xf32>
    %5 = tpu.matmul %3, %4, %cst_5 {dimension_numbers = #tpu.dot_dimension_numbers<[1], [0], [0], [1], [0, 0, 1, 1], [], []>} : vector<2x48xf32>, vector<48x256xf32>, vector<2x256xf32> -> vector<2x256xf32>
    %6 = vector.extract_strided_slice %5 {offsets = [0, 16], sizes = [2, 240], strides = [1, 1]} : vector<2x256xf32> to vector<2x240xf32>
    %7 = vector.extract_strided_slice %5 {offsets = [0, 0], sizes = [2, 16], strides = [1, 1]} : vector<2x256xf32> to vector<2x16xf32>
    %8 = tpu.concatenate %6, %7 in 1 : vector<2x240xf32>, vector<2x16xf32> -> vector<2x256xf32>
    %9 = arith.addf %2, %8 : vector<2x256xf32>
    %c0_6 = arith.constant 0 : index
    %c0_7 = arith.constant 0 : index
    %10 = vector.load %arg3[%c0_6, %c0_7] : memref<2x1xf32, #tpu.memory_space<vmem>>, vector<2x1xf32>
    %11 = vector.broadcast %10 : vector<2x1xf32> to vector<2x256xf32>
    %12 = arith.addf %9, %11 : vector<2x256xf32>
    %cst_8 = arith.constant 0.000000e+00 : f32
    %13 = vector.broadcast %cst_8 : f32 to vector<2x256xf32>
    %14 = arith.maximumf %12, %13 : vector<2x256xf32>
    %c0_9 = arith.constant 0 : index
    %c0_10 = arith.constant 0 : index
    %15 = vector.load %arg5[%c0_9, %c0_10] : memref<2x256xf32, #tpu.memory_space<vmem>>, vector<2x256xf32>
    tpu.vector_store %arg5[%c0_9, %c0_10], %14 {strides = array<i32>} : memref<2x256xf32, #tpu.memory_space<vmem>>, vector<2x256xf32>,
    return
  }
  func.func @transform_0(%arg0: i32) -> (i32, i32) {
    %c0_i32 = arith.constant 0 : i32
    %c0_i32_0 = arith.constant 0 : i32
    %c0_i32_1 = arith.constant 0 : i32
    return %c0_i32, %c0_i32_0 : i32, i32
  }
  func.func @transform_1(%arg0: i32) -> (i32, i32) {
    %c0_i32 = arith.constant 0 : i32
    %c0_i32_0 = arith.constant 0 : i32
    %c0_i32_1 = arith.constant 0 : i32
    return %c0_i32, %c0_i32_0 : i32, i32
  }
  func.func @transform_2(%arg0: i32) -> (i32, i32) {
    %c0_i32 = arith.constant 0 : i32
    %c0_i32_0 = arith.constant 0 : i32
    %c0_i32_1 = arith.constant 0 : i32
    return %c0_i32, %c0_i32_0 : i32, i32
  }
  func.func @transform_3(%arg0: i32) -> (i32, i32) {
    %c0_i32 = arith.constant 0 : i32
    %c0_i32_0 = arith.constant 0 : i32
    return %c0_i32, %arg0 : i32, i32
  }
  func.func @transform_4(%arg0: i32) -> (i32, i32) {
    %c0_i32 = arith.constant 0 : i32
    %c0_i32_0 = arith.constant 0 : i32
    return %c0_i32, %arg0 : i32, i32
  }
}

</mosaic_0001>

<llo_original>
// kernel: net_1d_forward.1
$region0: #{net_1d_forward.1}
  #allocation0 [shape = 'u32[]', space=smem, size = 0x4, offset = 0x4, fixed_abs, tag = 'smem constant byte address 0x4 - core index']
  #allocation1 [shape = 'u32[72,128]{1,0:T(1,128)}', space=vmem, size = 0x9000, scoped, tag = 'internal scratch']
  %s0 = inlined_call_operand.vmem [shape: f32[2,96], index: 0, kind: input, shape index: {}]
  %s1 = inlined_call_operand.vmem [shape: f32[2,48], index: 1, kind: input, shape index: {}]
  %s2 = inlined_call_operand.vmem [shape: f32[2,1], index: 2, kind: input, shape index: {}]
  %s3 = inlined_call_operand.vmem [shape: f32[96,512], index: 3, kind: input, shape index: {}]
  %s4 = inlined_call_operand.vmem [shape: f32[2,512], index: 4, kind: output, shape index: {}]
  %s5 = sld [smem:[#allocation0]]
  $region72: #{net_1d_forward.1} parent=0
    _
  %s7 = ssub.s32 1, %s5
  %s8 = scalar_select 0, %s7, %s5
  $region1: #{net_1d_forward.1} parent=0
    #allocation2 [shape = 'u8[196608]{0}', space=vmem, size = 0x30000, scoped, tag = 'input window, operand 3']
    loop: start=0, step=1, limit=4
    $region2: #{net_1d_forward.1} parent=1 // loop_pre_header
      _
    $region3: #{net_1d_forward.1} parent=1 // loop_header
      %s10 = sphi 0, %s14
      %p11 = scmp.ge.s32.totalorder %s10, 4
      %s18 = sphi 0, %s18
      %s20 = sphi 0, %s18
      %s21 = sphi 0, %s20
      %s35 = sphi 0, %s21
      %s39 = sphi 0, %s39
      %s41 = sphi 0, %s39
      %s42 = sphi 0, %s41
      %s56 = sphi 0, %s42
      %s60 = sphi 0, %s60
      %s62 = sphi 0, %s60
      %s63 = sphi 0, %s62
      %s77 = sphi 0, %s63
      %s83 = sphi 0, %s85
      %s86 = sphi 0, %s83
      %s87 = sphi 0, %s86
      %s103 = sphi 0, %s87
      %s109 = sphi 0, %s111
      %s112 = sphi 0, %s109
      %s113 = sphi 0, %s112
      %s129 = sphi 0, %s113
    $region4: #{net_1d_forward.1} parent=1 // loop_header_branch
      %13 = sbr.rel (%p11) target = $region8
    $region5: #{net_1d_forward.1} parent=1 // loop_body
      %s15 = ssub.s32 %s10, 1
      %s16 = ssub.s32 %s10, 2
      %s17 = sadd.s32 %s10, 1
      %s19 = sadd.s32 %s18, 1
      %p22 = scmp.eq.s32.totalorder %s10, 1
      %p23 = scmp.ne.s32.totalorder %s18, %s20
      %p24 = scmp.eq.s32.totalorder %s10, 0
      %p25 = por %p23, %p24
      %p26 = scmp.ne.s32.totalorder %s18, %s20
      %p27 = scmp.eq.s32.totalorder %s15, 1
      %p28 = por %p26, %p27
      %p29 = scmp.ne.s32.totalorder %s20, %s21
      %p30 = scmp.eq.s32.totalorder %s15, 0
      %p31 = por %p29, %p30
      %p32 = scmp.ne.s32.totalorder %s20, %s21
      %p33 = scmp.eq.s32.totalorder %s16, 1
      %p34 = por %p32, %p33
      %p36 = scmp.ne.s32.totalorder %s21, %s35
      %p37 = scmp.eq.s32.totalorder %s16, 0
      %p38 = por %p36, %p37
      %s40 = sadd.s32 %s39, 1
      %p43 = scmp.eq.s32.totalorder %s10, 1
      %p44 = scmp.ne.s32.totalorder %s39, %s41
      %p45 = scmp.eq.s32.totalorder %s10, 0
      %p46 = por %p44, %p45
      %p47 = scmp.ne.s32.totalorder %s39, %s41
      %p48 = scmp.eq.s32.totalorder %s15, 1
      %p49 = por %p47, %p48
      %p50 = scmp.ne.s32.totalorder %s41, %s42
      %p51 = scmp.eq.s32.totalorder %s15, 0
      %p52 = por %p50, %p51
      %p53 = scmp.ne.s32.totalorder %s41, %s42
      %p54 = scmp.eq.s32.totalorder %s16, 1
      %p55 = por %p53, %p54
      %p57 = scmp.ne.s32.totalorder %s42, %s56
      %p58 = scmp.eq.s32.totalorder %s16, 0
      %p59 = por %p57, %p58
      %s61 = sadd.s32 %s60, 1
      %p64 = scmp.eq.s32.totalorder %s10, 1
      %p65 = scmp.ne.s32.totalorder %s60, %s62
      %p66 = scmp.eq.s32.totalorder %s10, 0
      %p67 = por %p65, %p66
      %p68 = scmp.ne.s32.totalorder %s60, %s62
      %p69 = scmp.eq.s32.totalorder %s15, 1
      %p70 = por %p68, %p69
      %p71 = scmp.ne.s32.totalorder %s62, %s63
      %p72 = scmp.eq.s32.totalorder %s15, 0
      %p73 = por %p71, %p72
      %p74 = scmp.ne.s32.totalorder %s62, %s63
      %p75 = scmp.eq.s32.totalorder %s16, 1
      %p76 = por %p74, %p75
      %p78 = scmp.ne.s32.totalorder %s63, %s77
      %p79 = scmp.eq.s32.totalorder %s16, 0
      %p80 = por %p78, %p79
      %s81 = ssub.s32 %s10, %s17
      %p82 = scmp.eq.s32.totalorder %s81, 0
      %s84 = sadd.s32 %s83, 1
      %s85 = scalar_select %p82, %s83, %s84
      %p88 = pneg %p82
      %p89 = scmp.eq.s32.totalorder %s10, 1
      %p90 = por %p88, %p89
      %p91 = scmp.ne.s32.totalorder %s83, %s86
      %p92 = scmp.eq.s32.totalorder %s10, 0
      %p93 = por %p91, %p92
      %p94 = scmp.ne.s32.totalorder %s83, %s86
      %p95 = scmp.eq.s32.totalorder %s15, 1
      %p96 = por %p94, %p95
      %p97 = scmp.ne.s32.totalorder %s86, %s87
      %p98 = scmp.eq.s32.totalorder %s15, 0
      %p99 = por %p97, %p98
      %p100 = scmp.ne.s32.totalorder %s86, %s87
      %p101 = scmp.eq.s32.totalorder %s16, 1
      %p102 = por %p100, %p101
      %p104 = scmp.ne.s32.totalorder %s87, %s103
      %p105 = scmp.eq.s32.totalorder %s16, 0
      %p106 = por %p104, %p105
      %s107 = ssub.s32 %s10, %s17
      %p108 = scmp.eq.s32.totalorder %s107, 0
      %s110 = sadd.s32 %s109, 1
      %s111 = scalar_select %p108, %s109, %s110
      %p114 = pneg %p108
      %p115 = scmp.eq.s32.totalorder %s10, 1
      %p116 = por %p114, %p115
      %p117 = scmp.ne.s32.totalorder %s109, %s112
      %p118 = scmp.eq.s32.totalorder %s10, 0
      %p119 = por %p117, %p118
      %p120 = scmp.ne.s32.totalorder %s109, %s112
      %p121 = scmp.eq.s32.totalorder %s15, 1
      %p122 = por %p120, %p121
      %p123 = scmp.ne.s32.totalorder %s112, %s113
      %p124 = scmp.eq.s32.totalorder %s15, 0
      %p125 = por %p123, %p124
      %p126 = scmp.ne.s32.totalorder %s112, %s113
      %p127 = scmp.eq.s32.totalorder %s16, 1
      %p128 = por %p126, %p127
      %p130 = scmp.ne.s32.totalorder %s113, %s129
      %p131 = scmp.eq.s32.totalorder %s16, 0
      %p132 = por %p130, %p131
      %p133 = scmp.le.s32.totalorder 1, %s10
      %p134 = scmp.lt.s32.totalorder %s10, 3
      %p135 = pnand %p133, %p134
      %p136 = pneg %p135
      // Predicated region
      $region9: #{net_1d_forward.1} parent=5 // pred_check
        _
      $region10: #{net_1d_forward.1} parent=5 // pred_check_branch
        %138 = sbr.rel (%p135) target = $region12
      $region11: #{net_1d_forward.1} parent=5 // pred_region
        %s139 = ssub.s32 %s10, 1
        // Predicated region
        $region13: #{net_1d_forward.1} parent=11 // pred_check
          %p140 = pneg %p31
        $region14: #{net_1d_forward.1} parent=11 // pred_check_branch
          %142 = sbr.rel (%p140) target = $region16
        $region15: #{net_1d_forward.1} parent=11 // pred_region
          _
        $region16: #{net_1d_forward.1} parent=11 // pred_fallthru
          _
        // Predicated region
        $region17: #{net_1d_forward.1} parent=11 // pred_check
          %p143 = pneg %p52
        $region18: #{net_1d_forward.1} parent=11 // pred_check_branch
          %145 = sbr.rel (%p143) target = $region20
        $region19: #{net_1d_forward.1} parent=11 // pred_region
          _
        $region20: #{net_1d_forward.1} parent=11 // pred_fallthru
          _
        // Predicated region
        $region21: #{net_1d_forward.1} parent=11 // pred_check
          %p146 = pneg %p73
        $region22: #{net_1d_forward.1} parent=11 // pred_check_branch
          %148 = sbr.rel (%p146) target = $region24
        $region23: #{net_1d_forward.1} parent=11 // pred_region
          _
        $region24: #{net_1d_forward.1} parent=11 // pred_fallthru
          _
      $region12: #{net_1d_forward.1} parent=5 // pred_fallthru
        _
      %p149 = scmp.lt.s32.totalorder %s10, 2
      // Predicated region
      $region25: #{net_1d_forward.1} parent=5 // pred_check
        %p150 = pneg %p149
      $region26: #{net_1d_forward.1} parent=5 // pred_check_branch
        %152 = sbr.rel (%p150) target = $region28
      $region27: #{net_1d_forward.1} parent=5 // pred_region
        // Predicated region
        $region29: #{net_1d_forward.1} parent=27 // pred_check
          %p153 = pneg %p93
        $region30: #{net_1d_forward.1} parent=27 // pred_check_branch
          %155 = sbr.rel (%p153) target = $region32
        $region31: #{net_1d_forward.1} parent=27 // pred_region
          %s156 = sand.u32 %s83, 1
          %s157 = sand.u32 %s83, 1
          %s158 = smul.addr %s157, 192
          %s159 = scalar_lea.vmem [#allocation2], %s158
          %s160 = smul.u32 2, %s10
          %s161 = smul.addr %s160, 8
          %s162 = scalar_lea.vmem %s3, %s161
          // Predicated region
          $region33: #{net_1d_forward.1} parent=31 // pred_check
            _
          $region34: #{net_1d_forward.1} parent=31 // pred_check_branch
            %164 = sbr.rel (0) target = $region36
          $region35: #{net_1d_forward.1} parent=31 // pred_region
            // Predicated region
            $region37: #{net_1d_forward.1} parent=35 // pred_check
              _
            $region38: #{net_1d_forward.1} parent=35 // pred_check_branch
              %166 = sbr.rel (0) target = $region40
            $region39: #{net_1d_forward.1} parent=35 // pred_region
              loop: start=0, step=1, limit=1
              $region41: #{net_1d_forward.1} parent=39 // loop_pre_header
                _
              $region42: #{net_1d_forward.1} parent=39 // loop_header
                %s168 = sphi 0, %s172
                %p169 = scmp.ge.s32.totalorder %s168, 1
                %s173 = sphi %s162, %s162
                %s174 = sphi %s159, %s159
              $region43: #{net_1d_forward.1} parent=39 // loop_header_branch
                %171 = sbr.rel (%p169) target = $region47
              $region44: #{net_1d_forward.1} parent=39 // loop_body
                %v175 = vld [vmem:[%s173] sm:$0xff]
                %176 = vst [vmem:[%s174] sm:$0xff] %v175
                %v177 = vld [vmem:[%s173 + $0x8] sm:$0xff]
                %178 = vst [vmem:[%s174 + $0x8] sm:$0xff] %v177
                %v179 = vld [vmem:[%s173 + $0x20] sm:$0xff]
                %180 = vst [vmem:[%s174 + $0x10] sm:$0xff] %v179
                %v181 = vld [vmem:[%s173 + $0x28] sm:$0xff]
                %182 = vst [vmem:[%s174 + $0x18] sm:$0xff] %v181
                %v183 = vld [vmem:[%s173 + $0x40] sm:$0xff]
                %184 = vst [vmem:[%s174 + $0x20] sm:$0xff] %v183
                %v185 = vld [vmem:[%s173 + $0x48] sm:$0xff]
                %186 = vst [vmem:[%s174 + $0x28] sm:$0xff] %v185
                %v187 = vld [vmem:[%s173 + $0x60] sm:$0xff]
                %188 = vst [vmem:[%s174 + $0x30] sm:$0xff] %v187
                %v189 = vld [vmem:[%s173 + $0x68] sm:$0xff]
                %190 = vst [vmem:[%s174 + $0x38] sm:$0xff] %v189
                %v191 = vld [vmem:[%s173 + $0x80] sm:$0xff]
                %192 = vst [vmem:[%s174 + $0x40] sm:$0xff] %v191
                %v193 = vld [vmem:[%s173 + $0x88] sm:$0xff]
                %194 = vst [vmem:[%s174 + $0x48] sm:$0xff] %v193
                %v195 = vld [vmem:[%s173 + $0xa0] sm:$0xff]
                %196 = vst [vmem:[%s174 + $0x50] sm:$0xff] %v195
                %v197 = vld [vmem:[%s173 + $0xa8] sm:$0xff]
                %198 = vst [vmem:[%s174 + $0x58] sm:$0xff] %v197
                %v199 = vld [vmem:[%s173 + $0xc0] sm:$0xff]
                %200 = vst [vmem:[%s174 + $0x60] sm:$0xff] %v199
                %v201 = vld [vmem:[%s173 + $0xc8] sm:$0xff]
                %202 = vst [vmem:[%s174 + $0x68] sm:$0xff] %v201
                %v203 = vld [vmem:[%s173 + $0xe0] sm:$0xff]
                %204 = vst [vmem:[%s174 + $0x70] sm:$0xff] %v203
                %v205 = vld [vmem:[%s173 + $0xe8] sm:$0xff]
                %206 = vst [vmem:[%s174 + $0x78] sm:$0xff] %v205
                %v207 = vld [vmem:[%s173 + $0x100] sm:$0xff]
                %208 = vst [vmem:[%s174 + $0x80] sm:$0xff] %v207
                %v209 = vld [vmem:[%s173 + $0x108] sm:$0xff]
                %210 = vst [vmem:[%s174 + $0x88] sm:$0xff] %v209
                %v211 = vld [vmem:[%s173 + $0x120] sm:$0xff]
                %212 = vst [vmem:[%s174 + $0x90] sm:$0xff] %v211
                %v213 = vld [vmem:[%s173 + $0x128] sm:$0xff]
                %214 = vst [vmem:[%s174 + $0x98] sm:$0xff] %v213
                %v215 = vld [vmem:[%s173 + $0x140] sm:$0xff]
                %216 = vst [vmem:[%s174 + $0xa0] sm:$0xff] %v215
                %v217 = vld [vmem:[%s173 + $0x148] sm:$0xff]
                %218 = vst [vmem:[%s174 + $0xa8] sm:$0xff] %v217
                %v219 = vld [vmem:[%s173 + $0x160] sm:$0xff]
                %220 = vst [vmem:[%s174 + $0xb0] sm:$0xff] %v219
                %v221 = vld [vmem:[%s173 + $0x168] sm:$0xff]
                %222 = vst [vmem:[%s174 + $0xb8] sm:$0xff] %v221
              $region45: #{net_1d_forward.1} parent=39 // loop_footer
                %s172 = sadd.s32 1, %s168
              $region46: #{net_1d_forward.1} parent=39 // loop_footer_branch
                %167 = sbr.rel target = $region42
              $region47: #{net_1d_forward.1} parent=39 // loop_exit
                _
            $region40: #{net_1d_forward.1} parent=35 // pred_fallthru
              _
            // Predicated region
            $region48: #{net_1d_forward.1} parent=35 // pred_check
              _
            $region49: #{net_1d_forward.1} parent=35 // pred_check_branch
              %224 = sbr.rel target = $region51
            $region50: #{net_1d_forward.1} parent=35 // pred_region
              _
            $region51: #{net_1d_forward.1} parent=35 // pred_fallthru
              _
          $region36: #{net_1d_forward.1} parent=31 // pred_fallthru
            _
          %225 = vnop
        $region32: #{net_1d_forward.1} parent=27 // pred_fallthru
          _
      $region28: #{net_1d_forward.1} parent=5 // pred_fallthru
        _
      %p226 = scmp.le.s32.totalorder 1, %s10
      %p227 = scmp.lt.s32.totalorder %s10, 3
      %p228 = pnand %p226, %p227
      %p229 = pneg %p228
      // Predicated region
      $region52: #{net_1d_forward.1} parent=5 // pred_check
        _
      $region53: #{net_1d_forward.1} parent=5 // pred_check_branch
        %231 = sbr.rel (%p228) target = $region55
      $region54: #{net_1d_forward.1} parent=5 // pred_region
        %s232 = ssub.s32 %s10, 1
        %s233 = sand.u32 %s86, 1
        %s234 = sand.u32 %s86, 1
        %s235 = smul.addr %s234, 192
        %s236 = scalar_lea.vmem [#allocation2], %s235
        // Predicated region
        $region56: #{net_1d_forward.1} parent=54 // pred_check
          %p237 = pneg %p99
        $region57: #{net_1d_forward.1} parent=54 // pred_check_branch
          %239 = sbr.rel (%p237) target = $region59
        $region58: #{net_1d_forward.1} parent=54 // pred_region
          _
        $region59: #{net_1d_forward.1} parent=54 // pred_fallthru
          _
        %p240 = pneg %p31
        %p241 = pneg %p28
        %p242 = pneg %p52
        %p243 = pneg %p49
        %p244 = pneg %p73
        %p245 = pneg %p70
        %s246 = sand.u32 %s86, 1
        %s247 = sand.u32 %s86, 1
        %s248 = smul.addr %s247, 192
        %s249 = scalar_lea.vmem [#allocation2], %s248
        %p250 = pneg %p99
        %p251 = pneg %p96
        %p252 = pneg %p125
        %p253 = pneg %p122
        %s254 = smul.u32 2, %s15
        %p255 = scmp.lt.s32.totalorder %s254, 3
        %s256 = scalar_select %p255, %s254, 3
        %s257 = smul.addr %s256, 2
        %s258 = scalar_lea.vmem %s4, %s257
        %s259 = smul.u32 2, %s15
        %s260 = smul.u32 2, %s15
        %p261 = scmp.lt.s32.totalorder %s260, 3
        %s262 = scalar_select %p261, %s260, 3
        %s263 = smul.addr %s262, 2
        %s264 = scalar_lea.vmem %s4, %s263
        %s265 = smul.u32 2, %s15
        %v266 = vld [vmem:[%s236] sm:$0xff]
        %v267 = vld [vmem:[%s236 + $0x8] sm:$0xff]
        %v268 = vld [vmem:[%s236 + $0x10] sm:$0xff]
        %v269 = vld [vmem:[%s236 + $0x18] sm:$0xff]
        %v270 = vld [vmem:[%s236 + $0x20] sm:$0xff]
        %v271 = vld [vmem:[%s236 + $0x28] sm:$0xff]
        %v272 = vld [vmem:[%s236 + $0x30] sm:$0xff]
        %v273 = vld [vmem:[%s236 + $0x38] sm:$0xff]
        %v274 = vld [vmem:[%s236 + $0x40] sm:$0xff]
        %v275 = vld [vmem:[%s236 + $0x48] sm:$0xff]
        %v276 = vld [vmem:[%s236 + $0x50] sm:$0xff]
        %v277 = vld [vmem:[%s236 + $0x58] sm:$0xff]
        %v278 = vld [vmem:[%s236 + $0x60] sm:$0xff]
        %v279 = vld [vmem:[%s236 + $0x68] sm:$0xff]
        %v280 = vld [vmem:[%s236 + $0x70] sm:$0xff]
        %v281 = vld [vmem:[%s236 + $0x78] sm:$0xff]
        %v282 = vld [vmem:[%s236 + $0x80] sm:$0xff]
        %v283 = vld [vmem:[%s236 + $0x88] sm:$0xff]
        %v284 = vld [vmem:[%s236 + $0x90] sm:$0xff]
        %v285 = vld [vmem:[%s236 + $0x98] sm:$0xff]
        %v286 = vld [vmem:[%s236 + $0xa0] sm:$0xff]
        %v287 = vld [vmem:[%s236 + $0xa8] sm:$0xff]
        %v288 = vld [vmem:[%s236 + $0xb0] sm:$0xff]
        %v289 = vld [vmem:[%s236 + $0xb8] sm:$0xff]
        %v290 = vld [vmem:[%s0] sm:$0x3]
        %v291 = vld [vmem:[%s1] sm:$0x3]
        %vm292 = vcmask 392192
        %v294 = vsel %vm292, %v291, 0
        %296 = vmatpush.msra.mxu0 0.0
        %297 = vmatpush.msra.mxu0 0.0
        %298 = vmatpush.msra.mxu0 0.0
        %299 = vmatpush.msra.mxu0 0.0
        %300 = vmatpush.msra.mxu0 0.0
        %301 = vmatpush.msra.mxu0 0.0
        %302 = vmatpush.msra.mxu0 0.0
        %303 = vmatpush.msra.mxu0 0.0
        %304 = vmatpush.msra.mxu0 0.0
        %305 = vmatpush.msra.mxu0 0.0
        %306 = vmatpush.msra.mxu0 %v276
        %307 = vmatpush.msra.mxu0 %v274
        %308 = vmatpush.msra.mxu0 %v272
        %309 = vmatpush.msra.mxu0 %v270
        %310 = vmatpush.msra.mxu0 %v268
        %311 = vmatpush.msra.mxu0 %v266
        %312 = vmatmul.f32.gmra.mxu0 %v294
        %v313 = vpop.f32.mrf.mxu0
        %v314 = vadd.f32 0.0, %v313
        %315 = vdwg.mxu0
        %316 = vmatpush.msra.mxu0 0.0
        %317 = vmatpush.msra.mxu0 0.0
        %318 = vmatpush.msra.mxu0 0.0
        %319 = vmatpush.msra.mxu0 0.0
        %320 = vmatpush.msra.mxu0 0.0
        %321 = vmatpush.msra.mxu0 0.0
        %322 = vmatpush.msra.mxu0 0.0
        %323 = vmatpush.msra.mxu0 0.0
        %324 = vmatpush.msra.mxu0 0.0
        %325 = vmatpush.msra.mxu0 0.0
        %326 = vmatpush.msra.mxu0 %v277
        %327 = vmatpush.msra.mxu0 %v275
        %328 = vmatpush.msra.mxu0 %v273
        %329 = vmatpush.msra.mxu0 %v271
        %330 = vmatpush.msra.mxu0 %v269
        %331 = vmatpush.msra.mxu0 %v267
        %332 = vmatmul.f32.gmra.mxu0 %v294
        %v333 = vpop.f32.mrf.mxu0
        %v334 = vadd.f32 0.0, %v333
        %335 = vdwg.mxu0
        %338 = vrot.lane.b32.xlu0 %v314, 112
        %v339 = vpop.permute.xlu0 %338
        %340 = vrot.lane.b32.xlu0 %v334, 112
        %v341 = vpop.permute.xlu0 %340
        %vm342 = vcmask 916480
        %v343 = vsel %vm342, %v339, %v341
        %v347 = vsel %vm342, %v341, %v339
        %vm348 = vcmask 785408
        %v350 = vsel %vm348, %v290, 0
        %352 = vmatpush.msra.mxu0 0.0
        %353 = vmatpush.msra.mxu0 0.0
        %354 = vmatpush.msra.mxu0 0.0
        %355 = vmatpush.msra.mxu0 0.0
        %356 = vmatpush.msra.mxu0 %v288
        %357 = vmatpush.msra.mxu0 %v286
        %358 = vmatpush.msra.mxu0 %v284
        %359 = vmatpush.msra.mxu0 %v282
        %360 = vmatpush.msra.mxu0 %v280
        %361 = vmatpush.msra.mxu0 %v278
        %362 = vmatpush.msra.mxu0 %v276
        %363 = vmatpush.msra.mxu0 %v274
        %364 = vmatpush.msra.mxu0 %v272
        %365 = vmatpush.msra.mxu0 %v270
        %366 = vmatpush.msra.mxu0 %v268
        %367 = vmatpush.msra.mxu0 %v266
        %368 = vmatmul.f32.gmra.mxu0 %v350
        %v369 = vpop.f32.mrf.mxu0
        %v370 = vadd.f32 %v343, %v369
        %371 = vdwg.mxu0
        %372 = vmatpush.msra.mxu0 0.0
        %373 = vmatpush.msra.mxu0 0.0
        %374 = vmatpush.msra.mxu0 0.0
        %375 = vmatpush.msra.mxu0 0.0
        %376 = vmatpush.msra.mxu0 %v289
        %377 = vmatpush.msra.mxu0 %v287
        %378 = vmatpush.msra.mxu0 %v285
        %379 = vmatpush.msra.mxu0 %v283
        %380 = vmatpush.msra.mxu0 %v281
        %381 = vmatpush.msra.mxu0 %v279
        %382 = vmatpush.msra.mxu0 %v277
        %383 = vmatpush.msra.mxu0 %v275
        %384 = vmatpush.msra.mxu0 %v273
        %385 = vmatpush.msra.mxu0 %v271
        %386 = vmatpush.msra.mxu0 %v269
        %387 = vmatpush.msra.mxu0 %v267
        %388 = vmatmul.f32.gmra.mxu0 %v350
        %v389 = vpop.f32.mrf.mxu0
        %v390 = vadd.f32 %v347, %v389
        %391 = vdwg.mxu0
        %v392 = vld [vmem:[%s2] sm:$0x3]
        %394 = vset.pattern.permute.xlu0 0
        %395 = vperm.xlu0 %394, %v392
        %v396 = vpop.permute.xlu0 %395
        %v398 = vadd.f32 %v370, %v396
        %v399 = vadd.f32 %v390, %v396
        %v400 = vmax.f32 %v398, 0.0
        %v401 = vmax.f32 %v399, 0.0
        %v404 = vrot.slane %v401, 6
        %vm405 = vcmask 1041408
        %v406 = vsel %vm405, %v400, %v404
        %408 = vst [vmem:[%s264] sm:$0xf] %v406
        %s409 = smul.u32 2, %s15
        %p410 = scmp.lt.s32.totalorder %s409, 3
        %s411 = scalar_select %p410, %s409, 3
        %s412 = smul.addr %s411, 2
        %s413 = scalar_lea.vmem %s4, %s412
        // Predicated region
        $region60: #{net_1d_forward.1} parent=54 // pred_check
          %p414 = pneg %p122
        $region61: #{net_1d_forward.1} parent=54 // pred_check_branch
          %416 = sbr.rel (%p414) target = $region63
        $region62: #{net_1d_forward.1} parent=54 // pred_region
          %s417 = smul.u32 2, %s15
        $region63: #{net_1d_forward.1} parent=54 // pred_fallthru
          _
      $region55: #{net_1d_forward.1} parent=5 // pred_fallthru
        _
      %p418 = scmp.le.s32.totalorder 2, %s10
      // Predicated region
      $region64: #{net_1d_forward.1} parent=5 // pred_check
        %p419 = pneg %p418
      $region65: #{net_1d_forward.1} parent=5 // pred_check_branch
        %421 = sbr.rel (%p419) target = $region67
      $region66: #{net_1d_forward.1} parent=5 // pred_region
        %s422 = ssub.s32 %s10, 2
        // Predicated region
        $region68: #{net_1d_forward.1} parent=66 // pred_check
          %p423 = pneg %p128
        $region69: #{net_1d_forward.1} parent=66 // pred_check_branch
          %425 = sbr.rel (%p423) target = $region71
        $region70: #{net_1d_forward.1} parent=66 // pred_region
          %s426 = smul.u32 2, %s16
          %p427 = scmp.lt.s32.totalorder %s426, 3
          %s428 = scalar_select %p427, %s426, 3
          %s429 = smul.addr %s428, 2
          %s430 = scalar_lea.vmem %s4, %s429
        $region71: #{net_1d_forward.1} parent=66 // pred_fallthru
          _
      $region67: #{net_1d_forward.1} parent=5 // pred_fallthru
        _
    $region6: #{net_1d_forward.1} parent=1 // loop_footer
      %s14 = sadd.s32 1, %s10
    $region7: #{net_1d_forward.1} parent=1 // loop_footer_branch
      %9 = sbr.rel target = $region3
    $region8: #{net_1d_forward.1} parent=1 // loop_exit
      _

</llo_original>
